<compile_context>
chip_gen: v7x
topology: tpu7x:2x2x1
jax: 0.10.0
libtpu: 0.0.40
codegen_flags: <defaults>
</compile_context>

<pallas_src>
from functools import partial

import jax
import jax.numpy as jnp
from jax.experimental import pallas as pl
from jax.experimental.pallas import tpu as pltpu


def _linear_kernel(x_ref, w_ref, b_ref, o_ref):
    # x_ref: (block_rows, lanes) tile in VMEM.
    # w_ref: (1, 1) f32 in SMEM; b_ref: (1,) f32 in SMEM.
    w = w_ref[0, 0]
    b = b_ref[0]
    x = x_ref[...].astype(jnp.float32)
    # y = x * w + b  (elementwise form of x @ W^T + b for a 1x1 weight).
    # The scalar->vreg splat + FMA is free filler under the DMA: this kernel
    # is purely HBM-bandwidth bound.
    o_ref[...] = (x * w + b).astype(o_ref.dtype)


def _round_up(x, m):
    return ((x + m - 1) // m) * m


@partial(jax.jit, static_argnames=("lanes", "max_block_rows", "core_parallel"))
def _linear_forward_impl(x, weight, bias, *, lanes, max_block_rows,
                         core_parallel):
    n = x.shape[0]
    weight = weight.astype(jnp.float32)
    bias = bias.astype(jnp.float32)

    # ---- lane-dense reshape (wrapper-side layout plumbing only) -----------
    flat = x.reshape(-1)                                   # (N,), free

    # Tiny batches: shrink the lane width so we don't DMA mostly padding.
    lanes = min(lanes, _round_up(n, 128))

    padded_n = _round_up(n, lanes)
    padded = padded_n != n
    if padded:
        # Pad only up to the next multiple of `lanes` (required for the
        # lane-dense 2-D view).  Skipped entirely when n % lanes == 0.
        flat = jnp.pad(flat, (0, padded_n - n))
    rows = padded_n // lanes

    if rows <= max_block_rows:
        # Single grid step; a full-extent row block is always a legal block
        # shape (no masking, no (8,128) divisibility requirement).
        block_rows = rows
    else:
        block_rows = max_block_rows
    grid = (pl.cdiv(rows, block_rows),)      # ragged last row-block is masked

    x2d = flat.reshape(rows, lanes)

    sem = pltpu.CORE_PARALLEL if core_parallel else pltpu.PARALLEL

    out2d = pl.pallas_call(
        _linear_kernel,
        out_shape=jax.ShapeDtypeStruct((rows, lanes), x.dtype),
        grid=grid,
        in_specs=[
            # NOTE (do not regress): the lane axis is never tiled -- the full
            # `lanes` width keeps every block a single contiguous HBM DMA and
            # the store path fully unmasked.
            pl.BlockSpec((block_rows, lanes), lambda i: (i, 0)),
            # Scalar weight / bias live whole in SMEM for every grid step.
            pl.BlockSpec(memory_space=pltpu.MemorySpace.SMEM),
            pl.BlockSpec(memory_space=pltpu.MemorySpace.SMEM),
        ],
        out_specs=pl.BlockSpec((block_rows, lanes), lambda i: (i, 0)),
        # Reuse the padded intermediate's HBM buffer for the output (same
        # shape/dtype, elementwise, block-identity mapping).  When no pad was
        # applied the input may alias the caller's buffer, so don't force it.
        input_output_aliases=({0: 0} if padded else {}),
        compiler_params=pltpu.CompilerParams(
            dimension_semantics=(sem,),
            # 4 MiB default tiles x (in+out) x double buffering = 16 MiB;
            # 48 MiB leaves pipelining headroom while staying under v7x's
            # 64 MiB-per-TC physical VMEM (v5e/v6e have 128 MiB).
            vmem_limit_bytes=48 << 20,
        ),
    )(x2d, weight, bias)

    out = out2d.reshape(-1)
    if padded:
        out = out[:n]
    return out.reshape(n, 1)


# Tri-state cache: None = not probed yet, True/False = CORE_PARALLEL accepted.
_CORE_PARALLEL_OK = None


def linear_forward(x, weight, bias, *, lanes=1024, max_block_rows=1024):
    """Forward of nn.Linear(1, 1): x (N, 1), weight (1, 1), bias (1,) -> (N, 1).

    `lanes` must be a multiple of 128 and `max_block_rows` a multiple of 8.
    Defaults give 1024 x 1024 f32 (4 MiB) tiles -- big enough to amortize the
    ~0.35 us per-grid-step cost on v6e/v7x while staying comfortably inside
    VMEM on every generation.
    """
    global _CORE_PARALLEL_OK
    assert lanes % 128 == 0 and lanes > 0
    assert max_block_rows % 8 == 0 and max_block_rows > 0
    assert x.ndim == 2 and x.shape[1] == 1

    n = x.shape[0]
    if n == 0:
        return jnp.zeros((0, 1), x.dtype)

    kwargs = dict(lanes=lanes, max_block_rows=max_block_rows)
    if _CORE_PARALLEL_OK is None:
        # Probe once: on v7x CORE_PARALLEL lets both TensorCores pull HBM;
        # fall back to PARALLEL if this chip/toolchain rejects it.
        try:
            out = jax.block_until_ready(
                _linear_forward_impl(x, weight, bias, core_parallel=True,
                                     **kwargs))
            _CORE_PARALLEL_OK = True
            return out
        except Exception:
            _CORE_PARALLEL_OK = False
    return _linear_forward_impl(x, weight, bias,
                                core_parallel=_CORE_PARALLEL_OK, **kwargs)


if __name__ == "__main__":
    key = jax.random.PRNGKey(0)
    k1, k2, k3 = jax.random.split(key, 3)

    # Deterministic synthetic parameters (no checkpoint load).
    weight = jnp.array([[2.0]], dtype=jnp.float32)   # (out=1, in=1)
    bias = jnp.array([0.5], dtype=jnp.float32)       # (out=1,)

    # Case 1: tiny batch matching the module's typical usage -> single grid
    # step with the lane width shrunk to 128.
    x_small = jax.random.normal(k1, (8, 1), dtype=jnp.float32)
    y_small = jax.block_until_ready(linear_forward(x_small, weight, bias))
    ref_small = x_small @ weight.T + bias
    assert y_small.shape == (8, 1)
    assert jnp.allclose(y_small, ref_small, atol=1e-6), "small-batch mismatch"

    # Case 2: n is a multiple of `lanes` -> no pad, no slice (the fast path);
    # deliberately small tiles so the multi-step pipelined grid is exercised.
    x_aligned = jax.random.normal(k2, (2048, 1), dtype=jnp.float32)
    y_aligned = jax.block_until_ready(
        linear_forward(x_aligned, weight, bias, lanes=128, max_block_rows=8))
    ref_aligned = x_aligned @ weight.T + bias
    assert y_aligned.shape == (2048, 1)
    assert jnp.allclose(y_aligned, ref_aligned, atol=1e-6), "aligned mismatch"

    # Case 3: ragged n -> exercises the minimal pad, the aliased output
    # buffer, and the tail slice.
    x_ragged = jax.random.normal(k3, (300, 1), dtype=jnp.float32)
    y_ragged = jax.block_until_ready(
        linear_forward(x_ragged, weight, bias, lanes=128, max_block_rows=8))
    ref_ragged = x_ragged @ weight.T + bias
    assert y_ragged.shape == (300, 1)
    assert jnp.allclose(y_ragged, ref_ragged, atol=1e-6), "ragged mismatch"

    print("KERNEL_OK")
</pallas_src>

<mosaic_0001>
module attributes {stable_mosaic.version = 11 : i64} {
  func.func @_linear_kernel(%arg0: i32, %arg1: memref<1x128xf32, #tpu.memory_space<vmem>>, %arg2: memref<1x1xf32, #tpu.memory_space<smem>>, %arg3: memref<1xf32, #tpu.memory_space<smem>>, %arg4: memref<1x128xf32, #tpu.memory_space<vmem>>) attributes {dimension_semantics = [#tpu.dimension_semantics<core_parallel>], iteration_bounds = array<i64: 1>, scalar_prefetch = 0 : i64, scratch_operands = 0 : i64, tpu.core_type = #tpu.core_type<tc>, window_params = [{transform_indices = @transform_0, window_bounds = array<i64: 1, 128>}, {transform_indices = @transform_1, window_bounds = array<i64: 1, 1>}, {transform_indices = @transform_2, window_bounds = array<i64: 1>}, {transform_indices = @transform_3, window_bounds = array<i64: 1, 128>}]} {
    %c0 = arith.constant 0 : index
    %c0_0 = arith.constant 0 : index
    %0 = memref.load %arg2[%c0, %c0_0] : memref<1x1xf32, #tpu.memory_space<smem>>
    %c0_1 = arith.constant 0 : index
    %1 = memref.load %arg3[%c0_1] : memref<1xf32, #tpu.memory_space<smem>>
    %c0_2 = arith.constant 0 : index
    %c0_3 = arith.constant 0 : index
    %2 = vector.load %arg1[%c0_2, %c0_3] : memref<1x128xf32, #tpu.memory_space<vmem>>, vector<1x128xf32>
    %3 = vector.broadcast %0 : f32 to vector<1x128xf32>
    %4 = arith.mulf %2, %3 : vector<1x128xf32>
    %5 = vector.broadcast %1 : f32 to vector<1x128xf32>
    %6 = arith.addf %4, %5 : vector<1x128xf32>
    %c0_4 = arith.constant 0 : index
    %c0_5 = arith.constant 0 : index
    %7 = vector.load %arg4[%c0_4, %c0_5] : memref<1x128xf32, #tpu.memory_space<vmem>>, vector<1x128xf32>
    tpu.vector_store %arg4[%c0_4, %c0_5], %6 {strides = array<i32>} : memref<1x128xf32, #tpu.memory_space<vmem>>, vector<1x128xf32>,
    return
  }
  func.func @transform_0(%arg0: i32) -> (i32, i32) {
    %c0_i32 = arith.constant 0 : i32
    %c0_i32_0 = arith.constant 0 : i32
    return %arg0, %c0_i32 : i32, i32
  }
  func.func @transform_1(%arg0: i32) -> (i32, i32) {
    %c0_i32 = arith.constant 0 : i32
    %c0_i32_0 = arith.constant 0 : i32
    %c0_i32_1 = arith.constant 0 : i32
    return %c0_i32, %c0_i32_0 : i32, i32
  }
  func.func @transform_2(%arg0: i32) -> i32 {
    %c0_i32 = arith.constant 0 : i32
    %c0_i32_0 = arith.constant 0 : i32
    return %c0_i32 : i32
  }
  func.func @transform_3(%arg0: i32) -> (i32, i32) {
    %c0_i32 = arith.constant 0 : i32
    %c0_i32_0 = arith.constant 0 : i32
    return %arg0, %c0_i32 : i32, i32
  }
}

module attributes {stable_mosaic.version = 11 : i64} {
  func.func @_linear_kernel(%arg0: i32, %arg1: memref<1x128xf32, #tpu.memory_space<vmem>>, %arg2: memref<1x1xf32, #tpu.memory_space<smem>>, %arg3: memref<1xf32, #tpu.memory_space<smem>>, %arg4: memref<1x128xf32, #tpu.memory_space<vmem>>) attributes {dimension_semantics = [#tpu.dimension_semantics<parallel>], iteration_bounds = array<i64: 1>, scalar_prefetch = 0 : i64, scratch_operands = 0 : i64, tpu.core_type = #tpu.core_type<tc>, window_params = [{transform_indices = @transform_0, window_bounds = array<i64: 1, 128>}, {transform_indices = @transform_1, window_bounds = array<i64: 1, 1>}, {transform_indices = @transform_2, window_bounds = array<i64: 1>}, {transform_indices = @transform_3, window_bounds = array<i64: 1, 128>}]} {
    %c0 = arith.constant 0 : index
    %c0_0 = arith.constant 0 : index
    %0 = memref.load %arg2[%c0, %c0_0] : memref<1x1xf32, #tpu.memory_space<smem>>
    %c0_1 = arith.constant 0 : index
    %1 = memref.load %arg3[%c0_1] : memref<1xf32, #tpu.memory_space<smem>>
    %c0_2 = arith.constant 0 : index
    %c0_3 = arith.constant 0 : index
    %2 = vector.load %arg1[%c0_2, %c0_3] : memref<1x128xf32, #tpu.memory_space<vmem>>, vector<1x128xf32>
    %3 = vector.broadcast %0 : f32 to vector<1x128xf32>
    %4 = arith.mulf %2, %3 : vector<1x128xf32>
    %5 = vector.broadcast %1 : f32 to vector<1x128xf32>
    %6 = arith.addf %4, %5 : vector<1x128xf32>
    %c0_4 = arith.constant 0 : index
    %c0_5 = arith.constant 0 : index
    %7 = vector.load %arg4[%c0_4, %c0_5] : memref<1x128xf32, #tpu.memory_space<vmem>>, vector<1x128xf32>
    tpu.vector_store %arg4[%c0_4, %c0_5], %6 {strides = array<i32>} : memref<1x128xf32, #tpu.memory_space<vmem>>, vector<1x128xf32>,
    return
  }
  func.func @transform_0(%arg0: i32) -> (i32, i32) {
    %c0_i32 = arith.constant 0 : i32
    %c0_i32_0 = arith.constant 0 : i32
    return %arg0, %c0_i32 : i32, i32
  }
  func.func @transform_1(%arg0: i32) -> (i32, i32) {
    %c0_i32 = arith.constant 0 : i32
    %c0_i32_0 = arith.constant 0 : i32
    %c0_i32_1 = arith.constant 0 : i32
    return %c0_i32, %c0_i32_0 : i32, i32
  }
  func.func @transform_2(%arg0: i32) -> i32 {
    %c0_i32 = arith.constant 0 : i32
    %c0_i32_0 = arith.constant 0 : i32
    return %c0_i32 : i32
  }
  func.func @transform_3(%arg0: i32) -> (i32, i32) {
    %c0_i32 = arith.constant 0 : i32
    %c0_i32_0 = arith.constant 0 : i32
    return %arg0, %c0_i32 : i32, i32
  }
}

</mosaic_0001>

<llo_original>
// kernel: _linear_forward_impl.1
$region0: #{_linear_forward_impl.1}
  #allocation0 [shape = 'u32[]', space=smem, size = 0x4, offset = 0x4, fixed_abs, tag = 'smem constant byte address 0x4 - core index']
  #allocation1 [shape = 'u32[144,128]{1,0:T(1,128)}', space=vmem, size = 0x12000, scoped, tag = 'internal scratch']
  #allocation2 [shape = 'f32[1,1]{1,0:T(1,128)S(6)}', space=smem, size = 0x200, scoped, tag = 'scoped memory for _linear_forward_impl.1']
  #allocation3 [shape = 'f32[1]{0:T(128)S(6)}', space=smem, size = 0x200, scoped, tag = 'scoped memory for _linear_forward_impl.1']
  %s0 = inlined_call_operand.vmem [shape: f32[1,128], index: 0, kind: input, shape index: {}, may-alias: {0,3}]
  %s1 = inlined_call_operand.<no memory space> [shape: f32[1,1], index: 1, kind: input, shape index: {}]
  %s2 = inlined_call_operand.<no memory space> [shape: f32[1], index: 2, kind: input, shape index: {}]
  %s3 = inlined_call_operand.vmem [shape: f32[1,128], index: 3, kind: output, shape index: {}, may-alias: {0,3}]
  %s4 = sld [smem:[#allocation0]]
  $region22: #{_linear_forward_impl.1} parent=0
    _
  %s6 = ssub.s32 1, %s4
  %s7 = scalar_select 0, %s6, %s4
  %8 = sst [smem:[#allocation2]] %s1
  %9 = sst [smem:[#allocation3]] %s2
  // Predicated region
  $region2: #{_linear_forward_impl.1} parent=0 // pred_check
    _
  $region3: #{_linear_forward_impl.1} parent=0 // pred_check_branch
    %11 = sbr.rel (0) target = $region5
  $region4: #{_linear_forward_impl.1} parent=0 // pred_region
    %p12 = scmp.lt.s32.totalorder %s7, 0
    %s13 = scalar_select %p12, %s7, 0
    %s14 = scalar_lea.vmem %s0, %s13
  $region5: #{_linear_forward_impl.1} parent=0 // pred_fallthru
    _
  // Predicated region
  $region6: #{_linear_forward_impl.1} parent=0 // pred_check
    _
  $region7: #{_linear_forward_impl.1} parent=0 // pred_check_branch
    %16 = sbr.rel (0) target = $region9
  $region8: #{_linear_forward_impl.1} parent=0 // pred_region
    _
  $region9: #{_linear_forward_impl.1} parent=0 // pred_fallthru
    _
  // Predicated region
  $region10: #{_linear_forward_impl.1} parent=0 // pred_check
    _
  $region11: #{_linear_forward_impl.1} parent=0 // pred_check_branch
    %18 = sbr.rel (0) target = $region13
  $region12: #{_linear_forward_impl.1} parent=0 // pred_region
    _
  $region13: #{_linear_forward_impl.1} parent=0 // pred_fallthru
    _
  %p19 = scmp.lt.s32.totalorder %s7, 0
  %s20 = scalar_select %p19, %s7, 0
  %s21 = scalar_lea.vmem %s0, %s20
  %p22 = scmp.lt.s32.totalorder %s7, 0
  %s23 = scalar_select %p22, %s7, 0
  %s24 = scalar_lea.vmem %s3, %s23
  %p25 = scmp.lt.s32.totalorder %s7, 0
  %s26 = scalar_select %p25, %s7, 0
  %s27 = scalar_lea.vmem %s0, %s26
  %p28 = scmp.lt.s32.totalorder %s7, 0
  %s29 = scalar_select %p28, %s7, 0
  %s30 = scalar_lea.vmem %s3, %s29
  %s31 = sld [smem:[#allocation2]]
  %s32 = sld [smem:[#allocation3]]
  %v33 = vld [vmem:[%s27] sm:$0x1]
  %v34 = vstv %s31
  %v35 = vmul.f32 %v33, %v34
  %v36 = vstv %s32
  %v37 = vadd.f32 %v35, %v36
  %38 = vst [vmem:[%s30] sm:$0x1] %v37
  %p39 = scmp.lt.s32.totalorder %s7, 0
  %s40 = scalar_select %p39, %s7, 0
  %s41 = scalar_lea.vmem %s3, %s40
  // Predicated region
  $region14: #{_linear_forward_impl.1} parent=0 // pred_check
    _
  $region15: #{_linear_forward_impl.1} parent=0 // pred_check_branch
    %43 = sbr.rel (0) target = $region17
  $region16: #{_linear_forward_impl.1} parent=0 // pred_region
    _
  $region17: #{_linear_forward_impl.1} parent=0 // pred_fallthru
    _
  // Predicated region
  $region18: #{_linear_forward_impl.1} parent=0 // pred_check
    _
  $region19: #{_linear_forward_impl.1} parent=0 // pred_check_branch
    %45 = sbr.rel (0) target = $region21
  $region20: #{_linear_forward_impl.1} parent=0 // pred_region
    %p46 = scmp.lt.s32.totalorder %s7, 0
    %s47 = scalar_select %p46, %s7, 0
    %s48 = scalar_lea.vmem %s3, %s47
  $region21: #{_linear_forward_impl.1} parent=0 // pred_fallthru
    _

// kernel: _linear_forward_impl.1
$region0: #{_linear_forward_impl.1}
  #allocation0 [shape = 'u32[]', space=smem, size = 0x4, offset = 0x4, fixed_abs, tag = 'smem constant byte address 0x4 - core index']
  #allocation1 [shape = 'u32[144,128]{1,0:T(1,128)}', space=vmem, size = 0x12000, scoped, tag = 'internal scratch']
  #allocation2 [shape = 'f32[1,1]{1,0:T(1,128)S(6)}', space=smem, size = 0x200, scoped, tag = 'scoped memory for _linear_forward_impl.1']
  #allocation3 [shape = 'f32[1]{0:T(128)S(6)}', space=smem, size = 0x200, scoped, tag = 'scoped memory for _linear_forward_impl.1']
  %s0 = inlined_call_operand.vmem [shape: f32[1,128], index: 0, kind: input, shape index: {}, may-alias: {0,3}]
  %s1 = inlined_call_operand.<no memory space> [shape: f32[1,1], index: 1, kind: input, shape index: {}]
  %s2 = inlined_call_operand.<no memory space> [shape: f32[1], index: 2, kind: input, shape index: {}]
  %s3 = inlined_call_operand.vmem [shape: f32[1,128], index: 3, kind: output, shape index: {}, may-alias: {0,3}]
  %s4 = sld [smem:[#allocation0]]
  $region22: #{_linear_forward_impl.1} parent=0
    _
  %s6 = ssub.s32 1, %s4
  %s7 = scalar_select 0, %s6, %s4
  %8 = sst [smem:[#allocation2]] %s1
  %9 = sst [smem:[#allocation3]] %s2
  // Predicated region
  $region2: #{_linear_forward_impl.1} parent=0 // pred_check
    _
  $region3: #{_linear_forward_impl.1} parent=0 // pred_check_branch
    %11 = sbr.rel (0) target = $region5
  $region4: #{_linear_forward_impl.1} parent=0 // pred_region
    _
  $region5: #{_linear_forward_impl.1} parent=0 // pred_fallthru
    _
  // Predicated region
  $region6: #{_linear_forward_impl.1} parent=0 // pred_check
    _
  $region7: #{_linear_forward_impl.1} parent=0 // pred_check_branch
    %13 = sbr.rel (0) target = $region9
  $region8: #{_linear_forward_impl.1} parent=0 // pred_region
    _
  $region9: #{_linear_forward_impl.1} parent=0 // pred_fallthru
    _
  // Predicated region
  $region10: #{_linear_forward_impl.1} parent=0 // pred_check
    _
  $region11: #{_linear_forward_impl.1} parent=0 // pred_check_branch
    %15 = sbr.rel (0) target = $region13
  $region12: #{_linear_forward_impl.1} parent=0 // pred_region
    _
  $region13: #{_linear_forward_impl.1} parent=0 // pred_fallthru
    _
  %s16 = sld [smem:[#allocation2]]
  %s17 = sld [smem:[#allocation3]]
  %v18 = vld [vmem:[%s0] sm:$0x1]
  %v19 = vstv %s16
  %v20 = vmul.f32 %v18, %v19
  %v21 = vstv %s17
  %v22 = vadd.f32 %v20, %v21
  %23 = vst [vmem:[%s3] sm:$0x1] %v22
  // Predicated region
  $region14: #{_linear_forward_impl.1} parent=0 // pred_check
    _
  $region15: #{_linear_forward_impl.1} parent=0 // pred_check_branch
    %25 = sbr.rel (0) target = $region17
  $region16: #{_linear_forward_impl.1} parent=0 // pred_region
    _
  $region17: #{_linear_forward_impl.1} parent=0 // pred_fallthru
    _
  // Predicated region
  $region18: #{_linear_forward_impl.1} parent=0 // pred_check
    _
  $region19: #{_linear_forward_impl.1} parent=0 // pred_check_branch
    %27 = sbr.rel (0) target = $region21
  $region20: #{_linear_forward_impl.1} parent=0 // pred_region
    _
  $region21: #{_linear_forward_impl.1} parent=0 // pred_fallthru
    _

</llo_original>
